<compile_context>
chip_gen: v7x
topology: tpu7x:2x2x1
jax: 0.10.0
libtpu: 0.0.40
codegen_flags: <defaults>
</compile_context>

<pallas_src>
import numpy as np

import jax
import jax.numpy as jnp
from jax.experimental import pallas as pl
from jax.experimental.pallas import tpu as pltpu


_VMEM_BUDGET_BYTES = 64 * 1024 * 1024  # v7x per-TensorCore VMEM (most restrictive)


def _round_up(x, m):
    return (x + m - 1) // m * m


def _split_f32_to_bf16_planes(w):
    """Exact-ish 3-way bf16 decomposition of an f32 table: w ~= hi + mid + lo.

    Three bf16 planes carry ~24 mantissa bits total, so the gather result is
    reproduced to within ~1 f32 ulp while every MXU pass runs at native bf16
    width (3 passes total vs 6 for an f32 HIGHEST matmul).
    """
    w = w.astype(jnp.float32)
    hi = w.astype(jnp.bfloat16)
    r1 = w - hi.astype(jnp.float32)
    mid = r1.astype(jnp.bfloat16)
    r2 = r1 - mid.astype(jnp.float32)
    lo = r2.astype(jnp.bfloat16)
    return hi, mid, lo


def _embed_onehot_kernel(idx_ref, w_hi_ref, w_mid_ref, w_lo_ref, o_ref):
    """One grid step: gather TB table rows via one-hot MXU matmuls.

    idx_ref : (1, 1, TB) int32   token ids for this block (lane-dense tile)
    w_*_ref : (V_pad, D) bf16    bf16 planes of the table, whole array
                                 resident in VMEM (single-buffered)
    o_ref   : (TB, D) f32        output tile
    """
    ids = idx_ref[0]                                   # (1, TB) int32
    v_pad = w_hi_ref.shape[0]
    tb = ids.shape[-1]

    # onehot_t[v, t] = (ids[t] == v), built directly in (V, TB) orientation so
    # the lane-dense id row never needs a sublane relayout; bf16 feeds the MXU
    # at native input width.
    iota_v = jax.lax.broadcasted_iota(jnp.int32, (v_pad, tb), 0)
    onehot_t = (iota_v == ids).astype(jnp.bfloat16)    # (V_pad, TB)

    # out[t, d] = sum_v onehot_t[v, t] * w[v, d]  (contract dim 0 of both).
    dn = (((0,), (0,)), ((), ()))
    acc = jax.lax.dot_general(onehot_t, w_hi_ref[...], dn,
                              preferred_element_type=jnp.float32)
    acc += jax.lax.dot_general(onehot_t, w_mid_ref[...], dn,
                               preferred_element_type=jnp.float32)
    acc += jax.lax.dot_general(onehot_t, w_lo_ref[...], dn,
                               preferred_element_type=jnp.float32)
    o_ref[...] = acc.astype(o_ref.dtype)


def _pick_block_tokens(n, block_tokens):
    block_tokens = max(8, _round_up(block_tokens, 8))
    if n <= block_tokens:
        return _round_up(n, 8)
    # Prefer a block size (>=128) that divides n exactly so the kernel writes
    # the output at its final size and the post-kernel slice is a no-op.
    for cand in range(block_tokens, 127, -8):
        if n % cand == 0:
            return cand
    return block_tokens


def embedding_lookup(x, weight, *, block_tokens=512, onehot_max_vocab=4096):
    """out[..., :] = weight[x[...], :]   (nn.Embedding forward)."""
    V, D = weight.shape
    lead_shape = x.shape
    n = x.size
    idx = x.reshape(n).astype(jnp.int32)

    v_pad = _round_up(V, 8)
    tb = _pick_block_tokens(n, block_tokens)
    num_blocks = pl.cdiv(n, tb)
    n_pad = num_blocks * tb

    # VMEM accounting: single-buffered table planes + double-buffered idx/out
    # tiles + the (V_pad, TB) bf16 one-hot temporary, plus headroom.
    table_bytes = 3 * v_pad * D * 2
    io_bytes = 2 * tb * D * 4 + 2 * tb * 4
    scratch_bytes = 2 * v_pad * tb * 2
    vmem_needed = table_bytes + io_bytes + scratch_bytes + (8 << 20)

    if v_pad > onehot_max_vocab or vmem_needed > _VMEM_BUDGET_BYTES:
        # TODO(synk): large-vocab path — scalar-prefetch the ids and DMA-gather
        # >=8 rows per block (pl.Buffered(3)) instead of this XLA fallback.
        return jnp.take(weight, x, axis=0)

    w_hi, w_mid, w_lo = _split_f32_to_bf16_planes(weight)
    if v_pad != V:
        pad = ((0, v_pad - V), (0, 0))
        w_hi = jnp.pad(w_hi, pad)
        w_mid = jnp.pad(w_mid, pad)
        w_lo = jnp.pad(w_lo, pad)

    if n_pad != n:
        idx = jnp.pad(idx, (0, n_pad - n))         # pad with id 0 (valid row)
    idx3 = idx.reshape(num_blocks, 1, tb)

    out = pl.pallas_call(
        _embed_onehot_kernel,
        out_shape=jax.ShapeDtypeStruct((n_pad, D), jnp.float32),
        grid=(num_blocks,),
        in_specs=[
            # TB ids per grid step: one contiguous TB*4-byte DMA, dense tile.
            pl.BlockSpec((1, 1, tb), lambda i: (i, 0, 0)),
            # Whole table planes resident in VMEM, single-buffered.
            pl.BlockSpec(memory_space=pltpu.MemorySpace.VMEM),
            pl.BlockSpec(memory_space=pltpu.MemorySpace.VMEM),
            pl.BlockSpec(memory_space=pltpu.MemorySpace.VMEM),
        ],
        out_specs=pl.BlockSpec((tb, D), lambda i: (i, 0)),
        compiler_params=pltpu.CompilerParams(
            dimension_semantics=("parallel",),
            vmem_limit_bytes=int(min(vmem_needed, _VMEM_BUDGET_BYTES)),
        ),
    )(idx3, w_hi, w_mid, w_lo)

    if n_pad != n:
        out = out[:n]
    return out.reshape(*lead_shape, D).astype(weight.dtype)


class EmbeddingLayer:
    """JAX/Pallas port of DIN/embedding.py::EmbeddingLayer.

    PyTorch builds nn.Embedding(feature_dim, embedding_dim, padding_idx=0) and
    then overwrites ALL weights with N(0, 1e-4) (padding row included), so the
    forward pass is a plain table lookup.  padding_idx only affects gradients,
    which are out of scope for this forward kernel.
    """

    def __init__(self, feature_dim, embedding_dim, key):
        self.weight = (
            jax.random.normal(key, (feature_dim, embedding_dim), jnp.float32)
            * 1e-4
        )

    def __call__(self, x):
        return embedding_lookup(x, self.weight)


if __name__ == "__main__":
    key = jax.random.PRNGKey(0)
    k_w, k_x, k_w2, k_x2 = jax.random.split(key, 4)

    # Case 1: module-style shapes — single grid step, lane-aligned D.
    feature_dim, embedding_dim = 64, 128
    B, S = 2, 8
    layer = EmbeddingLayer(feature_dim, embedding_dim, k_w)
    x = jax.random.randint(k_x, (B, S), 0, feature_dim, dtype=jnp.int32)
    out = jax.block_until_ready(layer(x))
    ref = jnp.take(layer.weight, x, axis=0)
    np.testing.assert_allclose(np.asarray(out), np.asarray(ref),
                               rtol=1e-5, atol=1e-8)
    assert out.shape == (B, S, embedding_dim)

    # Case 2: multi-block grid with tail padding, odd vocab, non-128 D.
    V2, D2, B2, S2 = 97, 64, 3, 100
    w2 = jax.random.normal(k_w2, (V2, D2), jnp.float32) * 1e-4
    x2 = jax.random.randint(k_x2, (B2, S2), 0, V2, dtype=jnp.int32)
    out2 = jax.block_until_ready(embedding_lookup(x2, w2, block_tokens=128))
    ref2 = jnp.take(w2, x2, axis=0)
    np.testing.assert_allclose(np.asarray(out2), np.asarray(ref2),
                               rtol=1e-5, atol=1e-8)
    assert out2.shape == (B2, S2, D2)

    print("KERNEL_OK")
</pallas_src>

<mosaic_0001>
module attributes {stable_mosaic.version = 11 : i64} {
  func.func @_embed_onehot_kernel(%arg0: i32, %arg1: memref<1x1x16xi32, #tpu.memory_space<vmem>>, %arg2: memref<64x128xbf16, #tpu.memory_space<vmem>>, %arg3: memref<64x128xbf16, #tpu.memory_space<vmem>>, %arg4: memref<64x128xbf16, #tpu.memory_space<vmem>>, %arg5: memref<16x128xf32, #tpu.memory_space<vmem>>) attributes {dimension_semantics = [#tpu.dimension_semantics<parallel>], iteration_bounds = array<i64: 1>, scalar_prefetch = 0 : i64, scratch_operands = 0 : i64, tpu.core_type = #tpu.core_type<tc>, window_params = [{transform_indices = @transform_0, window_bounds = array<i64: 1, 1, 16>}, {pipeline_mode = #tpu.pipeline_mode<synchronous>, transform_indices = @transform_1, window_bounds = array<i64: 64, 128>}, {pipeline_mode = #tpu.pipeline_mode<synchronous>, transform_indices = @transform_2, window_bounds = array<i64: 64, 128>}, {pipeline_mode = #tpu.pipeline_mode<synchronous>, transform_indices = @transform_3, window_bounds = array<i64: 64, 128>}, {transform_indices = @transform_4, window_bounds = array<i64: 16, 128>}]} {
    %c0 = arith.constant 0 : index
    %c0_0 = arith.constant 0 : index
    %c0_1 = arith.constant 0 : index
    %0 = vector.load %arg1[%c0, %c0_0, %c0_1] : memref<1x1x16xi32, #tpu.memory_space<vmem>>, vector<1x1x16xi32>
    %1 = vector.shape_cast %0 : vector<1x1x16xi32> to vector<1x16xi32>
    %2 = tpu.iota {dimensions = array<i32: 0>} : vector<64x16xi32>
    %3 = vector.broadcast %1 : vector<1x16xi32> to vector<64x16xi32>
    %4 = arith.cmpi eq, %2, %3 : vector<64x16xi32>
    %5 = arith.extui %4 : vector<64x16xi1> to vector<64x16xi32>
    %6 = arith.sitofp %5 : vector<64x16xi32> to vector<64x16xf32>
    %7 = arith.truncf %6 : vector<64x16xf32> to vector<64x16xbf16>
    %c0_2 = arith.constant 0 : index
    %c0_3 = arith.constant 0 : index
    %8 = vector.load %arg2[%c0_2, %c0_3] : memref<64x128xbf16, #tpu.memory_space<vmem>>, vector<64x128xbf16>
    %cst = arith.constant dense<0.000000e+00> : vector<16x128xf32>
    %9 = tpu.matmul %7, %8, %cst {dimension_numbers = #tpu.dot_dimension_numbers<[0], [0], [1], [1], [0, 1, 1, 1], [], []>} : vector<64x16xbf16>, vector<64x128xbf16>, vector<16x128xf32> -> vector<16x128xf32>
    %c0_4 = arith.constant 0 : index
    %c0_5 = arith.constant 0 : index
    %10 = vector.load %arg3[%c0_4, %c0_5] : memref<64x128xbf16, #tpu.memory_space<vmem>>, vector<64x128xbf16>
    %cst_6 = arith.constant dense<0.000000e+00> : vector<16x128xf32>
    %11 = tpu.matmul %7, %10, %cst_6 {dimension_numbers = #tpu.dot_dimension_numbers<[0], [0], [1], [1], [0, 1, 1, 1], [], []>} : vector<64x16xbf16>, vector<64x128xbf16>, vector<16x128xf32> -> vector<16x128xf32>
    %12 = arith.addf %9, %11 : vector<16x128xf32>
    %c0_7 = arith.constant 0 : index
    %c0_8 = arith.constant 0 : index
    %13 = vector.load %arg4[%c0_7, %c0_8] : memref<64x128xbf16, #tpu.memory_space<vmem>>, vector<64x128xbf16>
    %cst_9 = arith.constant dense<0.000000e+00> : vector<16x128xf32>
    %14 = tpu.matmul %7, %13, %cst_9 {dimension_numbers = #tpu.dot_dimension_numbers<[0], [0], [1], [1], [0, 1, 1, 1], [], []>} : vector<64x16xbf16>, vector<64x128xbf16>, vector<16x128xf32> -> vector<16x128xf32>
    %15 = arith.addf %12, %14 : vector<16x128xf32>
    %c0_10 = arith.constant 0 : index
    %c0_11 = arith.constant 0 : index
    %16 = vector.load %arg5[%c0_10, %c0_11] : memref<16x128xf32, #tpu.memory_space<vmem>>, vector<16x128xf32>
    tpu.vector_store %arg5[%c0_10, %c0_11], %15 {strides = array<i32>} : memref<16x128xf32, #tpu.memory_space<vmem>>, vector<16x128xf32>,
    return
  }
  func.func @transform_0(%arg0: i32) -> (i32, i32, i32) {
    %c0_i32 = arith.constant 0 : i32
    %c0_i32_0 = arith.constant 0 : i32
    %c0_i32_1 = arith.constant 0 : i32
    return %arg0, %c0_i32, %c0_i32_0 : i32, i32, i32
  }
  func.func @transform_1(%arg0: i32) -> (i32, i32) {
    %c0_i32 = arith.constant 0 : i32
    %c0_i32_0 = arith.constant 0 : i32
    %c0_i32_1 = arith.constant 0 : i32
    return %c0_i32, %c0_i32_0 : i32, i32
  }
  func.func @transform_2(%arg0: i32) -> (i32, i32) {
    %c0_i32 = arith.constant 0 : i32
    %c0_i32_0 = arith.constant 0 : i32
    %c0_i32_1 = arith.constant 0 : i32
    return %c0_i32, %c0_i32_0 : i32, i32
  }
  func.func @transform_3(%arg0: i32) -> (i32, i32) {
    %c0_i32 = arith.constant 0 : i32
    %c0_i32_0 = arith.constant 0 : i32
    %c0_i32_1 = arith.constant 0 : i32
    return %c0_i32, %c0_i32_0 : i32, i32
  }
  func.func @transform_4(%arg0: i32) -> (i32, i32) {
    %c0_i32 = arith.constant 0 : i32
    %c0_i32_0 = arith.constant 0 : i32
    return %arg0, %c0_i32 : i32, i32
  }
}

</mosaic_0001>

<llo_original>
// kernel: tpu_custom_call.1
$region0: #{tpu_custom_call.1}
  #allocation0 [shape = 'u32[]', space=smem, size = 0x4, offset = 0x4, fixed_abs, tag = 'smem constant byte address 0x4 - core index']
  #allocation1 [shape = 'u32[144,128]{1,0:T(1,128)}', space=vmem, size = 0x12000, scoped, tag = 'internal scratch']
  %s0 = inlined_call_operand.hbm [shape: s32[1,1,16], index: 0, kind: input, shape index: {}]
  %s1 = inlined_call_operand.hbm [shape: bf16[64,128], index: 1, kind: input, shape index: {}]
  %s2 = inlined_call_operand.hbm [shape: bf16[64,128], index: 2, kind: input, shape index: {}]
  %s3 = inlined_call_operand.hbm [shape: bf16[64,128], index: 3, kind: input, shape index: {}]
  %s4 = inlined_call_operand.hbm [shape: f32[16,128], index: 4, kind: output, shape index: {}]
  %s5 = sld [smem:[#allocation0]]
  $region42: #{tpu_custom_call.1} parent=0
    _
  %s7 = ssub.s32 1, %s5
  %s8 = scalar_select 0, %s7, %s5
  $region1: #{tpu_custom_call.1} parent=0
    #allocation2 [shape = 'u8[512]{0}', space=vmem, size = 0x400, scoped, tag = 'input window, operand 0, single buffered']
    #allocation3 [shape = 's32[1]{0}', space=sflag, size = 0x4, scoped, tag = 'scoped memory for tpu_custom_call.1']
    #allocation4 [shape = 's32[1]{0}', space=sflag, size = 0x4, scoped, tag = 'scoped memory for tpu_custom_call.1']
    #allocation5 [shape = 'u8[16384]{0}', space=vmem, size = 0x4000, scoped, tag = 'input window, operand 1, single buffered']
    #allocation6 [shape = 's32[1]{0}', space=sflag, size = 0x4, scoped, tag = 'scoped memory for tpu_custom_call.1']
    #allocation7 [shape = 'u8[16384]{0}', space=vmem, size = 0x4000, scoped, tag = 'input window, operand 2, single buffered']
    #allocation8 [shape = 'u8[16384]{0}', space=vmem, size = 0x4000, scoped, tag = 'input window, operand 3, single buffered']
    #allocation9 [shape = 's32[1]{0}', space=sflag, size = 0x4, scoped, tag = 'scoped memory for tpu_custom_call.1']
    #allocation10 [shape = 'u8[8192]{0}', space=vmem, size = 0x2000, scoped, tag = 'output window, operand 0, single buffered']
    %9 = vsyncpa [#allocation3], 0
    %10 = vsyncpa [#allocation6], 0
    %11 = vsyncpa [#allocation9], 0
    %12 = vsyncpa [#allocation4], 0
    // Predicated region
    $region2: #{tpu_custom_call.1} parent=1 // pred_check
      _
    $region3: #{tpu_custom_call.1} parent=1 // pred_check_branch
      %14 = sbr.rel (0) target = $region5
    $region4: #{tpu_custom_call.1} parent=1 // pred_region
      %s16 = ssub.s32 16, 16
      %17 = vsyncadd [#allocation3], %s16
      %s19 = sshll.u32 [#allocation2], 4
      %s20 = int_to_ptr.vmem [resolvable:$true] %s19
      %22 = dma.hbm_to_vmem [thread:$0]  %s0, 16, %s20, [#allocation3]
    $region5: #{tpu_custom_call.1} parent=1 // pred_fallthru
      _
    // Predicated region
    $region6: #{tpu_custom_call.1} parent=1 // pred_check
      _
    $region7: #{tpu_custom_call.1} parent=1 // pred_check_branch
      %24 = sbr.rel (0) target = $region9
    $region8: #{tpu_custom_call.1} parent=1 // pred_region
      %s26 = ssub.s32 512, 512
      %27 = vsyncadd [#allocation6], %s26
      %s28 = sshll.u32 [#allocation5], 4
      %s29 = int_to_ptr.vmem [resolvable:$true] %s28
      %34 = dma.hbm_to_vmem [thread:$0]  %s1, 512, %s29, [#allocation6], 64, 64, 4
    $region9: #{tpu_custom_call.1} parent=1 // pred_fallthru
      _
    // Predicated region
    $region10: #{tpu_custom_call.1} parent=1 // pred_check
      _
    $region11: #{tpu_custom_call.1} parent=1 // pred_check_branch
      %36 = sbr.rel (0) target = $region13
    $region12: #{tpu_custom_call.1} parent=1 // pred_region
      %s38 = ssub.s32 512, 512
      %39 = vsyncadd [#allocation6], %s38
      %s40 = sshll.u32 [#allocation7], 4
      %s41 = int_to_ptr.vmem [resolvable:$true] %s40
      %46 = dma.hbm_to_vmem [thread:$0]  %s2, 512, %s41, [#allocation6], 64, 64, 4
    $region13: #{tpu_custom_call.1} parent=1 // pred_fallthru
      _
    // Predicated region
    $region14: #{tpu_custom_call.1} parent=1 // pred_check
      _
    $region15: #{tpu_custom_call.1} parent=1 // pred_check_branch
      %48 = sbr.rel (0) target = $region17
    $region16: #{tpu_custom_call.1} parent=1 // pred_region
      %s50 = ssub.s32 512, 512
      %51 = vsyncadd [#allocation9], %s50
      %s52 = sshll.u32 [#allocation8], 4
      %s53 = int_to_ptr.vmem [resolvable:$true] %s52
      %58 = dma.hbm_to_vmem [thread:$0]  %s3, 512, %s53, [#allocation9], 64, 64, 4
    $region17: #{tpu_custom_call.1} parent=1 // pred_fallthru
      _
    // Predicated region
    $region18: #{tpu_custom_call.1} parent=1 // pred_check
      _
    $region19: #{tpu_custom_call.1} parent=1 // pred_check_branch
      %60 = sbr.rel (0) target = $region21
    $region20: #{tpu_custom_call.1} parent=1 // pred_region
      %61 = dma.done [#allocation3], 16
    $region21: #{tpu_custom_call.1} parent=1 // pred_fallthru
      _
    // Predicated region
    $region22: #{tpu_custom_call.1} parent=1 // pred_check
      _
    $region23: #{tpu_custom_call.1} parent=1 // pred_check_branch
      %63 = sbr.rel (0) target = $region25
    $region24: #{tpu_custom_call.1} parent=1 // pred_region
      %64 = dma.done [#allocation6], 512
    $region25: #{tpu_custom_call.1} parent=1 // pred_fallthru
      _
    // Predicated region
    $region26: #{tpu_custom_call.1} parent=1 // pred_check
      _
    $region27: #{tpu_custom_call.1} parent=1 // pred_check_branch
      %66 = sbr.rel (0) target = $region29
    $region28: #{tpu_custom_call.1} parent=1 // pred_region
      %67 = dma.done [#allocation6], 512
    $region29: #{tpu_custom_call.1} parent=1 // pred_fallthru
      _
    // Predicated region
    $region30: #{tpu_custom_call.1} parent=1 // pred_check
      _
    $region31: #{tpu_custom_call.1} parent=1 // pred_check_branch
      %69 = sbr.rel (0) target = $region33
    $region32: #{tpu_custom_call.1} parent=1 // pred_region
      %70 = dma.done [#allocation9], 512
    $region33: #{tpu_custom_call.1} parent=1 // pred_fallthru
      _
    %v72 = vld [vmem:[#allocation2] sm:$0x1]
    %v73 = vlaneseq
    %v74 = vshrl.u32 %v73, 7
    %v75 = vadd.s32 %v74, 8
    %v76 = vadd.s32 %v74, 16
    %v77 = vadd.s32 %v74, 24
    %v78 = vadd.s32 %v74, 32
    %v79 = vadd.s32 %v74, 40
    %v80 = vadd.s32 %v74, 48
    %v81 = vadd.s32 %v74, 56
    %v82 = vlaneseq
    %v83 = vshrl.u32 %v82, 7
    %v84 = vsub.s32 0, %v83
    %v85 = vrot.slane %v72, %v84
    %vm86 = vcmp.eq.s32.totalorder %v74, %v85
    %vm87 = vcmp.eq.s32.totalorder %v75, %v85
    %vm88 = vcmp.eq.s32.totalorder %v76, %v85
    %vm89 = vcmp.eq.s32.totalorder %v77, %v85
    %vm90 = vcmp.eq.s32.totalorder %v78, %v85
    %vm91 = vcmp.eq.s32.totalorder %v79, %v85
    %vm92 = vcmp.eq.s32.totalorder %v80, %v85
    %vm93 = vcmp.eq.s32.totalorder %v81, %v85
    %v94 = vsel %vm86, 1, 0
    %v95 = vsel %vm87, 1, 0
    %v96 = vsel %vm88, 1, 0
    %v97 = vsel %vm89, 1, 0
    %v98 = vsel %vm90, 1, 0
    %v99 = vsel %vm91, 1, 0
    %v100 = vsel %vm92, 1, 0
    %v101 = vsel %vm93, 1, 0
    %v102 = vcvt.s32.f32 %v94
    %v103 = vcvt.s32.f32 %v95
    %v104 = vcvt.s32.f32 %v96
    %v105 = vcvt.s32.f32 %v97
    %v106 = vcvt.s32.f32 %v98
    %v107 = vcvt.s32.f32 %v99
    %v108 = vcvt.s32.f32 %v100
    %v109 = vcvt.s32.f32 %v101
    %v110 = vpack.c.bf16 %v103, %v102
    %v111 = vpack.c.bf16 %v105, %v104
    %v112 = vpack.c.bf16 %v107, %v106
    %v113 = vpack.c.bf16 %v109, %v108
    %v114 = vld [vmem:[#allocation5] sm:$0xf]
    %v115 = vld [vmem:[#allocation5 + $0x4] sm:$0xf]
    %v116 = vld [vmem:[#allocation5 + $0x8] sm:$0xf]
    %v117 = vld [vmem:[#allocation5 + $0xc] sm:$0xf]
    %v118 = vld [vmem:[#allocation5 + $0x10] sm:$0xf]
    %v119 = vld [vmem:[#allocation5 + $0x14] sm:$0xf]
    %v120 = vld [vmem:[#allocation5 + $0x18] sm:$0xf]
    %v121 = vld [vmem:[#allocation5 + $0x1c] sm:$0xf]
    %v122 = vld [vmem:[#allocation7] sm:$0xf]
    %v123 = vld [vmem:[#allocation7 + $0x4] sm:$0xf]
    %v124 = vld [vmem:[#allocation7 + $0x8] sm:$0xf]
    %v125 = vld [vmem:[#allocation7 + $0xc] sm:$0xf]
    %v126 = vld [vmem:[#allocation7 + $0x10] sm:$0xf]
    %v127 = vld [vmem:[#allocation7 + $0x14] sm:$0xf]
    %v128 = vld [vmem:[#allocation7 + $0x18] sm:$0xf]
    %v129 = vld [vmem:[#allocation7 + $0x1c] sm:$0xf]
    %130 = vxpose.xlu0.c.b16.start [1/8] %v110, 128
    %131 = vxpose.xlu0.c.b16.cont [2/8] %v111, 128
    %132 = vxpose.xlu0.c.b16.cont [3/8] %v112, 128
    %133 = vxpose.xlu0.c.b16.cont [4/8] %v113, 128
    %134 = vxpose.xlu0.c.b16.cont [5/8] 0, 128
    %135 = vxpose.xlu0.c.b16.cont [6/8] 0, 128
    %136 = vxpose.xlu0.c.b16.cont [7/8] 0, 128
    %137 = vxpose.xlu0.c.b16.end [8/8] 0, 128
    %v138 = vpop.trf.xlu0
    %v139 = vpop.trf.xlu0
    %v140 = vpop.trf.xlu0
    %v141 = vpop.trf.xlu0
    %v142 = vpop.trf.xlu0
    %v143 = vpop.trf.xlu0
    %v144 = vpop.trf.xlu0
    %v145 = vpop.trf.xlu0
    %v154 = vunpack.c.l.b16 %v122
    %v155 = vunpack.c.l.b16 %v123
    %v156 = vunpack.c.l.b16 %v124
    %v157 = vunpack.c.l.b16 %v125
    %v158 = vunpack.c.l.b16 %v126
    %v159 = vunpack.c.l.b16 %v127
    %v160 = vunpack.c.l.b16 %v128
    %v161 = vunpack.c.l.b16 %v129
    %v162 = vpack.c.b16 %v155, %v154
    %v163 = vpack.c.b16 %v157, %v156
    %v164 = vpack.c.b16 %v159, %v158
    %v165 = vpack.c.b16 %v161, %v160
    %vm170 = vcmask 523264
    %v172 = vsel %vm170, %v138, 0
    %174 = vmatprep.subr.bf16.mxu0 0
    %175 = vmatpush1.bf16.msra.mxu0 %v162
    %176 = vmatprep.subr.bf16.mxu0 0
    %177 = vmatpush1.bf16.msra.mxu0 %v163
    %178 = vmatprep.subr.bf16.mxu0 0
    %179 = vmatpush1.bf16.msra.mxu0 %v164
    %180 = vmatprep.subr.bf16.mxu0 0
    %181 = vmatpush1.bf16.msra.mxu0 %v165
    %182 = vmatprep.subr.bf16.mxu0 0
    %183 = vmatpush1.bf16.msra.mxu0 0
    %184 = vmatprep.subr.bf16.mxu0 0
    %185 = vmatpush1.bf16.msra.mxu0 0
    %186 = vmatprep.subr.bf16.mxu0 0
    %187 = vmatpush1.bf16.msra.mxu0 0
    %188 = vmatprep.subr.bf16.mxu0 0
    %189 = vmatpush1.bf16.msra.mxu0 0
    %190 = vmatprep.subr.bf16.mxu0 0
    %191 = vmatpush1.bf16.msra.mxu0 0
    %192 = vmatprep.subr.bf16.mxu0 0
    %193 = vmatpush1.bf16.msra.mxu0 0
    %194 = vmatprep.subr.bf16.mxu0 0
    %195 = vmatpush1.bf16.msra.mxu0 0
    %196 = vmatprep.subr.bf16.mxu0 0
    %197 = vmatpush1.bf16.msra.mxu0 0
    %198 = vmatprep.subr.bf16.mxu0 0
    %199 = vmatpush1.bf16.msra.mxu0 0
    %200 = vmatprep.subr.bf16.mxu0 0
    %201 = vmatpush1.bf16.msra.mxu0 0
    %202 = vmatprep.subr.bf16.mxu0 0
    %203 = vmatpush1.bf16.msra.mxu0 0
    %204 = vmatprep.subr.bf16.mxu0 0
    %205 = vmatpush1.bf16.msra.mxu0 0
    %206 = vmatprep.mubr.bf16.mxu0 0
    %207 = vmatmul.mubr.bf16.gmra.mrb[0].mxu0 %v172
    %v208 = vpop.f32.mrb[0].mxu0
    %v209 = vadd.f32 0.0, %v208
    %v210 = vpop.f32.mrb[0].mxu0
    %v211 = vpop.f32.mrb[0].mxu0
    %v212 = vadd.f32 0.0, %v211
    %v213 = vpop.f32.mrb[0].mxu0
    %214 = vdwg.mxu0
    %v223 = vunpack.c.l.b16 %v114
    %v224 = vunpack.c.l.b16 %v115
    %v225 = vunpack.c.l.b16 %v116
    %v226 = vunpack.c.l.b16 %v117
    %v227 = vunpack.c.l.b16 %v118
    %v228 = vunpack.c.l.b16 %v119
    %v229 = vunpack.c.l.b16 %v120
    %v230 = vunpack.c.l.b16 %v121
    %v231 = vpack.c.b16 %v224, %v223
    %v232 = vpack.c.b16 %v226, %v225
    %v233 = vpack.c.b16 %v228, %v227
    %v234 = vpack.c.b16 %v230, %v229
    %239 = vmatprep.subr.bf16.mxu0 0
    %240 = vmatpush1.bf16.msra.mxu0 %v231
    %241 = vmatprep.subr.bf16.mxu0 0
    %242 = vmatpush1.bf16.msra.mxu0 %v232
    %243 = vmatprep.subr.bf16.mxu0 0
    %244 = vmatpush1.bf16.msra.mxu0 %v233
    %245 = vmatprep.subr.bf16.mxu0 0
    %246 = vmatpush1.bf16.msra.mxu0 %v234
    %247 = vmatprep.subr.bf16.mxu0 0
    %248 = vmatpush1.bf16.msra.mxu0 0
    %249 = vmatprep.subr.bf16.mxu0 0
    %250 = vmatpush1.bf16.msra.mxu0 0
    %251 = vmatprep.subr.bf16.mxu0 0
    %252 = vmatpush1.bf16.msra.mxu0 0
    %253 = vmatprep.subr.bf16.mxu0 0
    %254 = vmatpush1.bf16.msra.mxu0 0
    %255 = vmatprep.subr.bf16.mxu0 0
    %256 = vmatpush1.bf16.msra.mxu0 0
    %257 = vmatprep.subr.bf16.mxu0 0
    %258 = vmatpush1.bf16.msra.mxu0 0
    %259 = vmatprep.subr.bf16.mxu0 0
    %260 = vmatpush1.bf16.msra.mxu0 0
    %261 = vmatprep.subr.bf16.mxu0 0
    %262 = vmatpush1.bf16.msra.mxu0 0
    %263 = vmatprep.subr.bf16.mxu0 0
    %264 = vmatpush1.bf16.msra.mxu0 0
    %265 = vmatprep.subr.bf16.mxu0 0
    %266 = vmatpush1.bf16.msra.mxu0 0
    %267 = vmatprep.subr.bf16.mxu0 0
    %268 = vmatpush1.bf16.msra.mxu0 0
    %269 = vmatprep.subr.bf16.mxu0 0
    %270 = vmatpush1.bf16.msra.mxu0 0
    %271 = vmatprep.mubr.bf16.mxu0 0
    %272 = vmatmul.mubr.bf16.gmra.mrb[0].mxu0 %v172
    %v273 = vpop.f32.mrb[0].mxu0
    %v274 = vadd.f32 %v209, %v273
    %v275 = vpop.f32.mrb[0].mxu0
    %v276 = vpop.f32.mrb[0].mxu0
    %v277 = vadd.f32 %v212, %v276
    %v278 = vpop.f32.mrb[0].mxu0
    %279 = vdwg.mxu0
    %v280 = vld [vmem:[#allocation8] sm:$0xf]
    %v281 = vld [vmem:[#allocation8 + $0x4] sm:$0xf]
    %v282 = vld [vmem:[#allocation8 + $0x8] sm:$0xf]
    %v283 = vld [vmem:[#allocation8 + $0xc] sm:$0xf]
    %v284 = vld [vmem:[#allocation8 + $0x10] sm:$0xf]
    %v285 = vld [vmem:[#allocation8 + $0x14] sm:$0xf]
    %v286 = vld [vmem:[#allocation8 + $0x18] sm:$0xf]
    %v287 = vld [vmem:[#allocation8 + $0x1c] sm:$0xf]
    %v296 = vunpack.c.l.b16 %v280
    %v297 = vunpack.c.l.b16 %v281
    %v298 = vunpack.c.l.b16 %v282
    %v299 = vunpack.c.l.b16 %v283
    %v300 = vunpack.c.l.b16 %v284
    %v301 = vunpack.c.l.b16 %v285
    %v302 = vunpack.c.l.b16 %v286
    %v303 = vunpack.c.l.b16 %v287
    %v304 = vpack.c.b16 %v297, %v296
    %v305 = vpack.c.b16 %v299, %v298
    %v306 = vpack.c.b16 %v301, %v300
    %v307 = vpack.c.b16 %v303, %v302
    %312 = vmatprep.subr.bf16.mxu0 0
    %313 = vmatpush1.bf16.msra.mxu0 %v304
    %314 = vmatprep.subr.bf16.mxu0 0
    %315 = vmatpush1.bf16.msra.mxu0 %v305
    %316 = vmatprep.subr.bf16.mxu0 0
    %317 = vmatpush1.bf16.msra.mxu0 %v306
    %318 = vmatprep.subr.bf16.mxu0 0
    %319 = vmatpush1.bf16.msra.mxu0 %v307
    %320 = vmatprep.subr.bf16.mxu0 0
    %321 = vmatpush1.bf16.msra.mxu0 0
    %322 = vmatprep.subr.bf16.mxu0 0
    %323 = vmatpush1.bf16.msra.mxu0 0
    %324 = vmatprep.subr.bf16.mxu0 0
    %325 = vmatpush1.bf16.msra.mxu0 0
    %326 = vmatprep.subr.bf16.mxu0 0
    %327 = vmatpush1.bf16.msra.mxu0 0
    %328 = vmatprep.subr.bf16.mxu0 0
    %329 = vmatpush1.bf16.msra.mxu0 0
    %330 = vmatprep.subr.bf16.mxu0 0
    %331 = vmatpush1.bf16.msra.mxu0 0
    %332 = vmatprep.subr.bf16.mxu0 0
    %333 = vmatpush1.bf16.msra.mxu0 0
    %334 = vmatprep.subr.bf16.mxu0 0
    %335 = vmatpush1.bf16.msra.mxu0 0
    %336 = vmatprep.subr.bf16.mxu0 0
    %337 = vmatpush1.bf16.msra.mxu0 0
    %338 = vmatprep.subr.bf16.mxu0 0
    %339 = vmatpush1.bf16.msra.mxu0 0
    %340 = vmatprep.subr.bf16.mxu0 0
    %341 = vmatpush1.bf16.msra.mxu0 0
    %342 = vmatprep.subr.bf16.mxu0 0
    %343 = vmatpush1.bf16.msra.mxu0 0
    %344 = vmatprep.mubr.bf16.mxu0 0
    %345 = vmatmul.mubr.bf16.gmra.mrb[0].mxu0 %v172
    %v346 = vpop.f32.mrb[0].mxu0
    %v347 = vadd.f32 0.0, %v346
    %v348 = vpop.f32.mrb[0].mxu0
    %v349 = vpop.f32.mrb[0].mxu0
    %v350 = vadd.f32 0.0, %v349
    %v351 = vpop.f32.mrb[0].mxu0
    %352 = vdwg.mxu0
    %v353 = vadd.f32 %v274, %v347
    %v354 = vadd.f32 %v277, %v350
    %355 = vst [vmem:[#allocation10] sm:$0xff] %v353
    %356 = vst [vmem:[#allocation10 + $0x8] sm:$0xff] %v354
    // Predicated region
    $region34: #{tpu_custom_call.1} parent=1 // pred_check
      _
    $region35: #{tpu_custom_call.1} parent=1 // pred_check_branch
      %358 = sbr.rel (0) target = $region37
    $region36: #{tpu_custom_call.1} parent=1 // pred_region
      %s360 = ssub.s32 256, 256
      %361 = vsyncadd [#allocation4], %s360
      %s362 = sshll.u32 [#allocation10], 4
      %s363 = int_to_ptr.vmem [resolvable:$true] %s362
      %368 = dma.vmem_to_hbm [thread:$0]  %s363, 256, %s4, [#allocation4], 128, 128, 8
    $region37: #{tpu_custom_call.1} parent=1 // pred_fallthru
      _
    // Predicated region
    $region38: #{tpu_custom_call.1} parent=1 // pred_check
      _
    $region39: #{tpu_custom_call.1} parent=1 // pred_check_branch
      %370 = sbr.rel (0) target = $region41
    $region40: #{tpu_custom_call.1} parent=1 // pred_region
      %371 = dma.done [#allocation4], 256
    $region41: #{tpu_custom_call.1} parent=1 // pred_fallthru
      _
    %372 = vsyncpa [#allocation3], 1
    %373 = vsyncpa [#allocation6], 1
    %374 = vsyncpa [#allocation9], 1
    %375 = vsyncpa [#allocation4], 1

</llo_original>
